<compile_context>
chip_gen: v5e
topology: v5e:2x2
jax: 0.10.0
libtpu: 0.0.40
codegen_flags: <defaults>
</compile_context>

<pallas_src>
import functools

import jax
import jax.numpy as jnp
from jax import lax
from jax.experimental import pallas as pl
from jax.experimental.pallas import tpu as pltpu


def _attn_decoder_kernel(
    gru_in_ref,    # [1, 3H]  cat(word_embedding, last_context, h_prev)
    w_gru_ref,     # [3H, 4H] pre-stacked GRU weights -> [r_pre | z_pre | gi_n | gh_n]
    b_gru_ref,     # [1, 4H]  pre-stacked GRU biases
    enc_ref,       # [S, H]   encoder outputs (seq on sublanes, hidden on lanes)
    w_attn_t_ref,  # [H, H]   attention linear, pre-transposed
    b_attn_ref,    # [1, H]
    w_out_t_ref,   # [2H, V]  output linear, pre-transposed
    b_out_ref,     # [1, V]
    out_ref,       # [1, V]   log-softmax output
    ctx_ref,       # [1, H]   new context
    hid_ref,       # [1, H]   new hidden state
    attn_ref,      # [1, S]   attention weights (lane-dense)
    *,
    compute_dtype,
):
    H = hid_ref.shape[-1]
    x = gru_in_ref[...]                      # [1, 3H]
    h_prev = x[:, 2 * H:3 * H]               # h_prev is the trailing H lanes

    # ---- GRU cell: single fused MXU push ----
    # columns of g: [0:H]=r preact, [H:2H]=z preact, [2H:3H]=gi_n, [3H:4H]=gh_n
    g = jnp.dot(x.astype(compute_dtype), w_gru_ref[...].astype(compute_dtype),
                preferred_element_type=jnp.float32) + b_gru_ref[...]
    r = jax.nn.sigmoid(g[:, 0:H])
    z = jax.nn.sigmoid(g[:, H:2 * H])
    n = jnp.tanh(g[:, 2 * H:3 * H] + r * g[:, 3 * H:4 * H])
    h_new = (1.0 - z) * n + z * h_prev
    hid_ref[...] = h_new

    # ---- attention: lane-dense [1,S] energies via MXU contraction over H ----
    enc = enc_ref[...]                                                        # [S, H]
    e = jnp.dot(enc.astype(compute_dtype), w_attn_t_ref[...].astype(compute_dtype),
                preferred_element_type=jnp.float32) + b_attn_ref[...]         # [S, H]
    energies = lax.dot_general(
        h_new.astype(compute_dtype), e.astype(compute_dtype),
        (((1,), (1,)), ((), ())),
        preferred_element_type=jnp.float32)                                   # [1, S]
    m = jnp.max(energies, axis=-1, keepdims=True)
    p = jnp.exp(energies - m)
    denom = jnp.sum(p, axis=-1, keepdims=True)
    attn_w = p * pl.reciprocal(denom, approx=True)                            # [1, S]
    attn_ref[...] = attn_w

    # ---- context = attn_w @ enc on the MXU ----
    ctx = jnp.dot(attn_w.astype(compute_dtype), enc.astype(compute_dtype),
                  preferred_element_type=jnp.float32)                         # [1, H]
    ctx_ref[...] = ctx

    # ---- output projection of cat(h_new, ctx), then log_softmax ----
    w_out_t = w_out_t_ref[...].astype(compute_dtype)
    logits = (jnp.dot(h_new.astype(compute_dtype), w_out_t[0:H, :],
                      preferred_element_type=jnp.float32)
              + jnp.dot(ctx.astype(compute_dtype), w_out_t[H:2 * H, :],
                        preferred_element_type=jnp.float32)
              + b_out_ref[...])                                               # [1, V]
    lmax = jnp.max(logits, axis=-1, keepdims=True)
    shifted = logits - lmax
    lse = jnp.log(jnp.sum(jnp.exp(shifted), axis=-1, keepdims=True))
    out_ref[...] = shifted - lse


def prepare_params(params):
    """One-time host-side weight prep (hoisted out of the decode step):
    pre-transpose linears, reshape biases, and stack the GRU weights into a
    single [3H, 4H] matrix so the whole cell is one MXU push."""
    H = params["w_hh"].shape[1]
    w_ih_t = params["w_ih"].T            # [2H, 3H], gate cols (r, z, n)
    w_hh_t = params["w_hh"].T            # [H, 3H]
    zeros_in = jnp.zeros((2 * H, H), jnp.float32)
    zeros_hh = jnp.zeros((H, H), jnp.float32)
    # rows 0:2H act on rnn_input=[emb, last_context]; rows 2H:3H act on h_prev.
    top = jnp.concatenate([w_ih_t[:, :2 * H], w_ih_t[:, 2 * H:], zeros_in], axis=1)  # [2H, 4H]
    bot = jnp.concatenate([w_hh_t[:, :2 * H], zeros_hh, w_hh_t[:, 2 * H:]], axis=1)  # [H, 4H]
    w_gru = jnp.concatenate([top, bot], axis=0)                                       # [3H, 4H]
    b_gru = jnp.concatenate(
        [params["b_ih"][:2 * H] + params["b_hh"][:2 * H],
         params["b_ih"][2 * H:], params["b_hh"][2 * H:]]).reshape(1, 4 * H)
    return {
        "embedding": params["embedding"],
        "w_gru": w_gru,
        "b_gru": b_gru,
        "w_attn_t": params["w_attn"].T,
        "b_attn": params["b_attn"].reshape(1, -1),
        "w_out_t": params["w_out"].T,
        "b_out": params["b_out"].reshape(1, -1),
    }


def attn_decoder_apply(prepped, word_input, last_context, last_hidden,
                       encoder_outputs, compute_dtype=jnp.float32):
    """word_input: int32 [1]; last_context: [1,H]; last_hidden: [1,1,H];
    encoder_outputs: [S,1,H].  Returns (output[1,V], context[1,H],
    hidden[1,1,H], attn_weights[1,1,S]) — same as the PyTorch module."""
    H = prepped["w_attn_t"].shape[0]
    V = prepped["b_out"].shape[-1]
    S = encoder_outputs.shape[0]

    # glue: embedding gather + concat + reshapes (kernel does the hot math)
    # TODO(synk): for full autoregressive decoding, hoist the time loop into the
    # kernel (grid over steps + input_output_aliases) so weights stay VMEM-resident.
    emb = prepped["embedding"][word_input[0]].reshape(1, H)
    h_prev = last_hidden.reshape(1, H)
    gru_in = jnp.concatenate([emb, last_context, h_prev], axis=-1)            # [1, 3H]
    enc = encoder_outputs.reshape(S, H)

    vmem = pl.BlockSpec(memory_space=pltpu.MemorySpace.VMEM)
    fn = pl.pallas_call(
        functools.partial(_attn_decoder_kernel, compute_dtype=compute_dtype),
        out_shape=(
            jax.ShapeDtypeStruct((1, V), jnp.float32),
            jax.ShapeDtypeStruct((1, H), jnp.float32),
            jax.ShapeDtypeStruct((1, H), jnp.float32),
            jax.ShapeDtypeStruct((1, S), jnp.float32),
        ),
        in_specs=[vmem] * 8,
        out_specs=(vmem, vmem, vmem, vmem),
    )
    out, ctx, h_new, attn_row = fn(
        gru_in, prepped["w_gru"], prepped["b_gru"], enc,
        prepped["w_attn_t"], prepped["b_attn"],
        prepped["w_out_t"], prepped["b_out"],
    )
    return out, ctx, h_new.reshape(1, 1, H), attn_row.reshape(1, 1, S)


def _reference(params, word_input, last_context, last_hidden, encoder_outputs):
    """Pure-JAX reference of the PyTorch forward (for correctness check)."""
    H = params["w_hh"].shape[1]
    S = encoder_outputs.shape[0]
    emb = params["embedding"][word_input[0]].reshape(1, H)
    x = jnp.concatenate([emb, last_context], axis=-1)
    h = last_hidden.reshape(1, H)
    gi = x @ params["w_ih"].T + params["b_ih"]
    gh = h @ params["w_hh"].T + params["b_hh"]
    r = jax.nn.sigmoid(gi[:, :H] + gh[:, :H])
    z = jax.nn.sigmoid(gi[:, H:2 * H] + gh[:, H:2 * H])
    n = jnp.tanh(gi[:, 2 * H:] + r * gh[:, 2 * H:])
    h_new = (1.0 - z) * n + z * h
    enc = encoder_outputs.reshape(S, H)
    e = enc @ params["w_attn"].T + params["b_attn"]
    energies = (e * h_new).sum(-1)
    attn = jax.nn.softmax(energies)
    ctx = (attn[:, None] * enc).sum(0, keepdims=True)
    logits = jnp.concatenate([h_new, ctx], -1) @ params["w_out"].T + params["b_out"]
    out = jax.nn.log_softmax(logits, -1)
    return out, ctx, h_new.reshape(1, 1, H), attn.reshape(1, 1, S)


def init_params(key, hidden_size, output_size):
    H, V = hidden_size, output_size
    ks = jax.random.split(key, 7)

    def u(k, shape, fan_in):
        s = 1.0 / (fan_in ** 0.5)
        return jax.random.uniform(k, shape, jnp.float32, -s, s)

    return {
        "embedding": 0.1 * jax.random.normal(ks[0], (V, H), jnp.float32),
        "w_ih": u(ks[1], (3 * H, 2 * H), 2 * H),     # GRU gate order (r, z, n)
        "w_hh": u(ks[2], (3 * H, H), H),
        "b_ih": u(ks[3], (3 * H,), H),
        "b_hh": u(ks[4], (3 * H,), H),
        "w_attn": u(ks[5], (H, H), H),
        "b_attn": jnp.zeros((H,), jnp.float32),
        "w_out": u(ks[6], (V, 2 * H), 2 * H),
        "b_out": jnp.zeros((V,), jnp.float32),
    }


if __name__ == "__main__":
    HIDDEN, VOCAB, SEQ = 32, 40, 8

    key = jax.random.PRNGKey(0)
    k_par, k_ctx, k_hid, k_enc = jax.random.split(key, 4)
    params = init_params(k_par, HIDDEN, VOCAB)
    prepped = prepare_params(params)          # one-time weight layout prep

    word_input = jnp.array([3], dtype=jnp.int32)                         # [1]
    last_context = jax.random.normal(k_ctx, (1, HIDDEN), jnp.float32)    # [1, H]
    last_hidden = jax.random.normal(k_hid, (1, 1, HIDDEN), jnp.float32)  # [1, 1, H]
    encoder_outputs = jax.random.normal(k_enc, (SEQ, 1, HIDDEN), jnp.float32)  # [S, 1, H]

    step = jax.jit(attn_decoder_apply)
    out, ctx, hid, attn_w = step(
        prepped, word_input, last_context, last_hidden, encoder_outputs)
    jax.block_until_ready((out, ctx, hid, attn_w))

    # correctness vs pure-JAX reference (tolerance covers the EUP approx
    # reciprocal used for the attention-softmax normalization)
    r_out, r_ctx, r_hid, r_attn = _reference(
        params, word_input, last_context, last_hidden, encoder_outputs)
    assert out.shape == (1, VOCAB) and ctx.shape == (1, HIDDEN)
    assert hid.shape == (1, 1, HIDDEN) and attn_w.shape == (1, 1, SEQ)
    assert jnp.allclose(out, r_out, atol=5e-3, rtol=5e-3)
    assert jnp.allclose(ctx, r_ctx, atol=5e-3, rtol=5e-3)
    assert jnp.allclose(hid, r_hid, atol=5e-3, rtol=5e-3)
    assert jnp.allclose(attn_w, r_attn, atol=5e-3, rtol=5e-3)

    print("KERNEL_OK")
</pallas_src>

<mosaic_0001>
module attributes {stable_mosaic.version = 11 : i64} {
  func.func @_attn_decoder_kernel(%arg0: memref<1x96xf32, #tpu.memory_space<vmem>>, %arg1: memref<96x128xf32, #tpu.memory_space<vmem>>, %arg2: memref<1x128xf32, #tpu.memory_space<vmem>>, %arg3: memref<8x32xf32, #tpu.memory_space<vmem>>, %arg4: memref<32x32xf32, #tpu.memory_space<vmem>>, %arg5: memref<1x32xf32, #tpu.memory_space<vmem>>, %arg6: memref<64x40xf32, #tpu.memory_space<vmem>>, %arg7: memref<1x40xf32, #tpu.memory_space<vmem>>, %arg8: memref<1x40xf32, #tpu.memory_space<vmem>>, %arg9: memref<1x32xf32, #tpu.memory_space<vmem>>, %arg10: memref<1x32xf32, #tpu.memory_space<vmem>>, %arg11: memref<1x8xf32, #tpu.memory_space<vmem>>) attributes {dimension_semantics = [], scalar_prefetch = 0 : i64, scratch_operands = 0 : i64, tpu.core_type = #tpu.core_type<tc>} {
    %c0 = arith.constant 0 : index
    %c0_0 = arith.constant 0 : index
    %0 = vector.load %arg0[%c0, %c0_0] : memref<1x96xf32, #tpu.memory_space<vmem>>, vector<1x96xf32>
    %1 = vector.extract_strided_slice %0 {offsets = [0, 64], sizes = [1, 32], strides = [1, 1]} : vector<1x96xf32> to vector<1x32xf32>
    %c0_1 = arith.constant 0 : index
    %c0_2 = arith.constant 0 : index
    %2 = vector.load %arg1[%c0_1, %c0_2] : memref<96x128xf32, #tpu.memory_space<vmem>>, vector<96x128xf32>
    %cst = arith.constant dense<0.000000e+00> : vector<1x128xf32>
    %3 = tpu.matmul %0, %2, %cst {dimension_numbers = #tpu.dot_dimension_numbers<[1], [0], [0], [1], [0, 0, 1, 1], [], []>} : vector<1x96xf32>, vector<96x128xf32>, vector<1x128xf32> -> vector<1x128xf32>
    %c0_3 = arith.constant 0 : index
    %c0_4 = arith.constant 0 : index
    %4 = vector.load %arg2[%c0_3, %c0_4] : memref<1x128xf32, #tpu.memory_space<vmem>>, vector<1x128xf32>
    %5 = arith.addf %3, %4 : vector<1x128xf32>
    %6 = vector.extract_strided_slice %5 {offsets = [0, 0], sizes = [1, 32], strides = [1, 1]} : vector<1x128xf32> to vector<1x32xf32>
    %7 = arith.negf %6 : vector<1x32xf32>
    %8 = math.exp %7 : vector<1x32xf32>
    %cst_5 = arith.constant 1.000000e+00 : f32
    %9 = vector.broadcast %cst_5 : f32 to vector<1x32xf32>
    %10 = arith.addf %9, %8 : vector<1x32xf32>
    %11 = arith.divf %9, %10 : vector<1x32xf32>
    %12 = vector.extract_strided_slice %5 {offsets = [0, 32], sizes = [1, 32], strides = [1, 1]} : vector<1x128xf32> to vector<1x32xf32>
    %13 = arith.negf %12 : vector<1x32xf32>
    %14 = math.exp %13 : vector<1x32xf32>
    %cst_6 = arith.constant 1.000000e+00 : f32
    %15 = vector.broadcast %cst_6 : f32 to vector<1x32xf32>
    %16 = arith.addf %15, %14 : vector<1x32xf32>
    %17 = arith.divf %15, %16 : vector<1x32xf32>
    %18 = vector.extract_strided_slice %5 {offsets = [0, 64], sizes = [1, 32], strides = [1, 1]} : vector<1x128xf32> to vector<1x32xf32>
    %19 = vector.extract_strided_slice %5 {offsets = [0, 96], sizes = [1, 32], strides = [1, 1]} : vector<1x128xf32> to vector<1x32xf32>
    %20 = arith.mulf %11, %19 : vector<1x32xf32>
    %21 = arith.addf %18, %20 : vector<1x32xf32>
    %22 = math.tanh %21 : vector<1x32xf32>
    %cst_7 = arith.constant 1.000000e+00 : f32
    %23 = vector.broadcast %cst_7 : f32 to vector<1x32xf32>
    %24 = arith.subf %23, %17 : vector<1x32xf32>
    %25 = arith.mulf %24, %22 : vector<1x32xf32>
    %26 = arith.mulf %17, %1 : vector<1x32xf32>
    %27 = arith.addf %25, %26 : vector<1x32xf32>
    %c0_8 = arith.constant 0 : index
    %c0_9 = arith.constant 0 : index
    %28 = vector.load %arg10[%c0_8, %c0_9] : memref<1x32xf32, #tpu.memory_space<vmem>>, vector<1x32xf32>
    tpu.vector_store %arg10[%c0_8, %c0_9], %27 {strides = array<i32>} : memref<1x32xf32, #tpu.memory_space<vmem>>, vector<1x32xf32>,
    %c0_10 = arith.constant 0 : index
    %c0_11 = arith.constant 0 : index
    %29 = vector.load %arg3[%c0_10, %c0_11] : memref<8x32xf32, #tpu.memory_space<vmem>>, vector<8x32xf32>
    %c0_12 = arith.constant 0 : index
    %c0_13 = arith.constant 0 : index
    %30 = vector.load %arg4[%c0_12, %c0_13] : memref<32x32xf32, #tpu.memory_space<vmem>>, vector<32x32xf32>
    %cst_14 = arith.constant dense<0.000000e+00> : vector<8x32xf32>
    %31 = tpu.matmul %29, %30, %cst_14 {dimension_numbers = #tpu.dot_dimension_numbers<[1], [0], [0], [1], [0, 0, 1, 1], [], []>} : vector<8x32xf32>, vector<32x32xf32>, vector<8x32xf32> -> vector<8x32xf32>
    %c0_15 = arith.constant 0 : index
    %c0_16 = arith.constant 0 : index
    %32 = vector.load %arg5[%c0_15, %c0_16] : memref<1x32xf32, #tpu.memory_space<vmem>>, vector<1x32xf32>
    %33 = vector.broadcast %32 : vector<1x32xf32> to vector<8x32xf32>
    %34 = arith.addf %31, %33 : vector<8x32xf32>
    %cst_17 = arith.constant dense<0.000000e+00> : vector<1x8xf32>
    %35 = tpu.matmul %27, %34, %cst_17 {dimension_numbers = #tpu.dot_dimension_numbers<[1], [1], [0], [0], [0, 0, 1, 0], [], []>} : vector<1x32xf32>, vector<8x32xf32>, vector<1x8xf32> -> vector<1x8xf32>
    %cst_18 = arith.constant dense<0xFF800000> : vector<1xf32>
    %36 = vector.multi_reduction <maximumf>, %35, %cst_18 [1] : vector<1x8xf32> to vector<1xf32>
    %37 = vector.shape_cast %36 : vector<1xf32> to vector<1x1xf32>
    %38 = vector.broadcast %37 : vector<1x1xf32> to vector<1x8xf32>
    %39 = arith.subf %35, %38 : vector<1x8xf32>
    %40 = math.exp %39 : vector<1x8xf32>
    %cst_19 = arith.constant dense<0.000000e+00> : vector<1xf32>
    %41 = vector.multi_reduction <add>, %40, %cst_19 [1] : vector<1x8xf32> to vector<1xf32>
    %42 = vector.shape_cast %41 : vector<1xf32> to vector<1x1xf32>
    %43 = tpu.reciprocal %42 {approx = true} : vector<1x1xf32> -> vector<1x1xf32>
    %44 = vector.broadcast %43 : vector<1x1xf32> to vector<1x8xf32>
    %45 = arith.mulf %40, %44 : vector<1x8xf32>
    %c0_20 = arith.constant 0 : index
    %c0_21 = arith.constant 0 : index
    %46 = vector.load %arg11[%c0_20, %c0_21] : memref<1x8xf32, #tpu.memory_space<vmem>>, vector<1x8xf32>
    tpu.vector_store %arg11[%c0_20, %c0_21], %45 {strides = array<i32>} : memref<1x8xf32, #tpu.memory_space<vmem>>, vector<1x8xf32>,
    %cst_22 = arith.constant dense<0.000000e+00> : vector<1x32xf32>
    %47 = tpu.matmul %45, %29, %cst_22 {dimension_numbers = #tpu.dot_dimension_numbers<[1], [0], [0], [1], [0, 0, 1, 1], [], []>} : vector<1x8xf32>, vector<8x32xf32>, vector<1x32xf32> -> vector<1x32xf32>
    %c0_23 = arith.constant 0 : index
    %c0_24 = arith.constant 0 : index
    %48 = vector.load %arg9[%c0_23, %c0_24] : memref<1x32xf32, #tpu.memory_space<vmem>>, vector<1x32xf32>
    tpu.vector_store %arg9[%c0_23, %c0_24], %47 {strides = array<i32>} : memref<1x32xf32, #tpu.memory_space<vmem>>, vector<1x32xf32>,
    %c0_25 = arith.constant 0 : index
    %c0_26 = arith.constant 0 : index
    %49 = vector.load %arg6[%c0_25, %c0_26] : memref<64x40xf32, #tpu.memory_space<vmem>>, vector<64x40xf32>
    %50 = vector.extract_strided_slice %49 {offsets = [0, 0], sizes = [32, 40], strides = [1, 1]} : vector<64x40xf32> to vector<32x40xf32>
    %cst_27 = arith.constant dense<0.000000e+00> : vector<1x40xf32>
    %51 = tpu.matmul %27, %50, %cst_27 {dimension_numbers = #tpu.dot_dimension_numbers<[1], [0], [0], [1], [0, 0, 1, 1], [], []>} : vector<1x32xf32>, vector<32x40xf32>, vector<1x40xf32> -> vector<1x40xf32>
    %52 = vector.extract_strided_slice %49 {offsets = [32, 0], sizes = [32, 40], strides = [1, 1]} : vector<64x40xf32> to vector<32x40xf32>
    %cst_28 = arith.constant dense<0.000000e+00> : vector<1x40xf32>
    %53 = tpu.matmul %47, %52, %cst_28 {dimension_numbers = #tpu.dot_dimension_numbers<[1], [0], [0], [1], [0, 0, 1, 1], [], []>} : vector<1x32xf32>, vector<32x40xf32>, vector<1x40xf32> -> vector<1x40xf32>
    %54 = arith.addf %51, %53 : vector<1x40xf32>
    %c0_29 = arith.constant 0 : index
    %c0_30 = arith.constant 0 : index
    %55 = vector.load %arg7[%c0_29, %c0_30] : memref<1x40xf32, #tpu.memory_space<vmem>>, vector<1x40xf32>
    %56 = arith.addf %54, %55 : vector<1x40xf32>
    %cst_31 = arith.constant dense<0xFF800000> : vector<1xf32>
    %57 = vector.multi_reduction <maximumf>, %56, %cst_31 [1] : vector<1x40xf32> to vector<1xf32>
    %58 = vector.shape_cast %57 : vector<1xf32> to vector<1x1xf32>
    %59 = vector.broadcast %58 : vector<1x1xf32> to vector<1x40xf32>
    %60 = arith.subf %56, %59 : vector<1x40xf32>
    %61 = math.exp %60 : vector<1x40xf32>
    %cst_32 = arith.constant dense<0.000000e+00> : vector<1xf32>
    %62 = vector.multi_reduction <add>, %61, %cst_32 [1] : vector<1x40xf32> to vector<1xf32>
    %63 = vector.shape_cast %62 : vector<1xf32> to vector<1x1xf32>
    %64 = math.log %63 : vector<1x1xf32>
    %65 = vector.broadcast %64 : vector<1x1xf32> to vector<1x40xf32>
    %66 = arith.subf %60, %65 : vector<1x40xf32>
    %c0_33 = arith.constant 0 : index
    %c0_34 = arith.constant 0 : index
    %67 = vector.load %arg8[%c0_33, %c0_34] : memref<1x40xf32, #tpu.memory_space<vmem>>, vector<1x40xf32>
    tpu.vector_store %arg8[%c0_33, %c0_34], %66 {strides = array<i32>} : memref<1x40xf32, #tpu.memory_space<vmem>>, vector<1x40xf32>,
    return
  }
}

</mosaic_0001>

<llo_original>
// kernel: attn_decoder_apply.1
$region0: #{attn_decoder_apply.1}
  #allocation0 [shape = 'u32[]', space=smem, size = 0x4, offset = 0x4, fixed_abs, tag = 'smem constant byte address 0x4 - core index']
  #allocation1 [shape = 'u32[72,128]{1,0:T(1,128)}', space=vmem, size = 0x9000, scoped, tag = 'internal scratch']
  %s0 = inlined_call_operand.vmem [shape: f32[1,96], index: 0, kind: input, shape index: {}]
  %s1 = inlined_call_operand.vmem [shape: f32[96,128], index: 1, kind: input, shape index: {}]
  %s2 = inlined_call_operand.vmem [shape: f32[1,128], index: 2, kind: input, shape index: {}]
  %s3 = inlined_call_operand.vmem [shape: f32[8,32], index: 3, kind: input, shape index: {}]
  %s4 = inlined_call_operand.vmem [shape: f32[32,32], index: 4, kind: input, shape index: {}]
  %s5 = inlined_call_operand.vmem [shape: f32[1,32], index: 5, kind: input, shape index: {}]
  %s6 = inlined_call_operand.vmem [shape: f32[64,40], index: 6, kind: input, shape index: {}]
  %s7 = inlined_call_operand.vmem [shape: f32[1,40], index: 7, kind: input, shape index: {}]
  %s8 = inlined_call_operand.hbm [shape: f32[1,40], index: 8, kind: output, shape index: {0}]
  %s9 = inlined_call_operand.hbm [shape: f32[1,32], index: 9, kind: output, shape index: {1}]
  %s10 = inlined_call_operand.hbm [shape: f32[1,32], index: 10, kind: output, shape index: {2}]
  %s11 = inlined_call_operand.hbm [shape: f32[1,8], index: 11, kind: output, shape index: {3}]
  %12 = xla_tuple %s8, %s9, %s10, %s11
  %s13 = sld [smem:[#allocation0]]
  $region66: #{attn_decoder_apply.1} parent=0
    _
  %s15 = ssub.s32 1, %s13
  %s16 = scalar_select 0, %s15, %s13
  $region1: #{attn_decoder_apply.1} parent=0
    #allocation2 [shape = 'u8[512]{0}', space=vmem, size = 0x400, scoped, tag = 'output window, operand 0, single buffered']
    #allocation3 [shape = 's32[1]{0}', space=sflag, size = 0x4, scoped, tag = 'scoped memory for attn_decoder_apply.1']
    #allocation4 [shape = 'u8[512]{0}', space=vmem, size = 0x400, scoped, tag = 'output window, operand 1, single buffered']
    #allocation5 [shape = 's32[1]{0}', space=sflag, size = 0x4, scoped, tag = 'scoped memory for attn_decoder_apply.1']
    #allocation6 [shape = 'u8[512]{0}', space=vmem, size = 0x400, scoped, tag = 'output window, operand 2, single buffered']
    #allocation7 [shape = 'u8[512]{0}', space=vmem, size = 0x400, scoped, tag = 'output window, operand 3, single buffered']
    #allocation8 [shape = 's32[1]{0}', space=sflag, size = 0x4, scoped, tag = 'scoped memory for attn_decoder_apply.1']
    %17 = vsyncpa [#allocation3], 0
    %18 = vsyncpa [#allocation5], 0
    %19 = vsyncpa [#allocation8], 0
    // Predicated region
    $region2: #{attn_decoder_apply.1} parent=1 // pred_check
      _
    $region3: #{attn_decoder_apply.1} parent=1 // pred_check_branch
      %21 = sbr.rel (0) target = $region5
    $region4: #{attn_decoder_apply.1} parent=1 // pred_region
      _
    $region5: #{attn_decoder_apply.1} parent=1 // pred_fallthru
      _
    // Predicated region
    $region6: #{attn_decoder_apply.1} parent=1 // pred_check
      _
    $region7: #{attn_decoder_apply.1} parent=1 // pred_check_branch
      %23 = sbr.rel (0) target = $region9
    $region8: #{attn_decoder_apply.1} parent=1 // pred_region
      _
    $region9: #{attn_decoder_apply.1} parent=1 // pred_fallthru
      _
    // Predicated region
    $region10: #{attn_decoder_apply.1} parent=1 // pred_check
      _
    $region11: #{attn_decoder_apply.1} parent=1 // pred_check_branch
      %25 = sbr.rel (0) target = $region13
    $region12: #{attn_decoder_apply.1} parent=1 // pred_region
      _
    $region13: #{attn_decoder_apply.1} parent=1 // pred_fallthru
      _
    // Predicated region
    $region14: #{attn_decoder_apply.1} parent=1 // pred_check
      _
    $region15: #{attn_decoder_apply.1} parent=1 // pred_check_branch
      %27 = sbr.rel (0) target = $region17
    $region16: #{attn_decoder_apply.1} parent=1 // pred_region
      _
    $region17: #{attn_decoder_apply.1} parent=1 // pred_fallthru
      _
    // Predicated region
    $region18: #{attn_decoder_apply.1} parent=1 // pred_check
      _
    $region19: #{attn_decoder_apply.1} parent=1 // pred_check_branch
      %29 = sbr.rel (0) target = $region21
    $region20: #{attn_decoder_apply.1} parent=1 // pred_region
      _
    $region21: #{attn_decoder_apply.1} parent=1 // pred_fallthru
      _
    // Predicated region
    $region22: #{attn_decoder_apply.1} parent=1 // pred_check
      _
    $region23: #{attn_decoder_apply.1} parent=1 // pred_check_branch
      %31 = sbr.rel (0) target = $region25
    $region24: #{attn_decoder_apply.1} parent=1 // pred_region
      _
    $region25: #{attn_decoder_apply.1} parent=1 // pred_fallthru
      _
    // Predicated region
    $region26: #{attn_decoder_apply.1} parent=1 // pred_check
      _
    $region27: #{attn_decoder_apply.1} parent=1 // pred_check_branch
      %33 = sbr.rel (0) target = $region29
    $region28: #{attn_decoder_apply.1} parent=1 // pred_region
      _
    $region29: #{attn_decoder_apply.1} parent=1 // pred_fallthru
      _
    // Predicated region
    $region30: #{attn_decoder_apply.1} parent=1 // pred_check
      _
    $region31: #{attn_decoder_apply.1} parent=1 // pred_check_branch
      %35 = sbr.rel (0) target = $region33
    $region32: #{attn_decoder_apply.1} parent=1 // pred_region
      _
    $region33: #{attn_decoder_apply.1} parent=1 // pred_fallthru
      _
    %v36 = vld [vmem:[%s0] sm:$0x1]
    %v37 = vld [vmem:[%s1] sm:$0xff]
    %v38 = vld [vmem:[%s1 + $0x8] sm:$0xff]
    %v39 = vld [vmem:[%s1 + $0x10] sm:$0xff]
    %v40 = vld [vmem:[%s1 + $0x18] sm:$0xff]
    %v41 = vld [vmem:[%s1 + $0x20] sm:$0xff]
    %v42 = vld [vmem:[%s1 + $0x28] sm:$0xff]
    %v43 = vld [vmem:[%s1 + $0x30] sm:$0xff]
    %v44 = vld [vmem:[%s1 + $0x38] sm:$0xff]
    %v45 = vld [vmem:[%s1 + $0x40] sm:$0xff]
    %v46 = vld [vmem:[%s1 + $0x48] sm:$0xff]
    %v47 = vld [vmem:[%s1 + $0x50] sm:$0xff]
    %v48 = vld [vmem:[%s1 + $0x58] sm:$0xff]
    %v49 = vld [vmem:[%s2] sm:$0x1]
    %vm50 = vcmask 785408
    %v52 = vsel %vm50, %v36, 0
    %54 = vmatpush.msra.mxu0 0.0
    %55 = vmatpush.msra.mxu0 0.0
    %56 = vmatpush.msra.mxu0 0.0
    %57 = vmatpush.msra.mxu0 0.0
    %58 = vmatpush.msra.mxu0 %v48
    %59 = vmatpush.msra.mxu0 %v47
    %60 = vmatpush.msra.mxu0 %v46
    %61 = vmatpush.msra.mxu0 %v45
    %62 = vmatpush.msra.mxu0 %v44
    %63 = vmatpush.msra.mxu0 %v43
    %64 = vmatpush.msra.mxu0 %v42
    %65 = vmatpush.msra.mxu0 %v41
    %66 = vmatpush.msra.mxu0 %v40
    %67 = vmatpush.msra.mxu0 %v39
    %68 = vmatpush.msra.mxu0 %v38
    %69 = vmatpush.msra.mxu0 %v37
    %70 = vmatmul.f32.gmra.mxu0 %v52
    %v71 = vpop.f32.mrf.mxu0
    %v72 = vadd.f32 %v49, %v71
    %73 = vdwg.mxu0
    %v74 = vxor.u32 %v72, 2147483648
    %v75 = vmul.f32 %v74, 1.442695
    %v76 = vpow.pop %v75
    %v77 = vadd.f32 %v76, 1.0
    %v78 = vrcp.pop %v77
    %v79 = vmul.f32 %v77, %v78
    %v80 = vsub.f32 1.0, %v79
    %v81 = vmul.f32 %v78, %v80
    %v82 = vadd.f32 %v78, %v81
    %vm83 = vweird.f32 %v77
    %vm84 = vweird.f32 %v78
    %vm85 = vmor %vm83, %vm84
    %v86 = vsel %vm85, %v78, %v82
    %v87 = vand.u32 2147483647, %v77
    %vm88 = vcmp.eq.f32.partialorder %v87, 8.507059e+37
    %v89 = vand.u32 %v77, 2147483648
    %v90 = vor.u32 1.1754944e-38, %v89
    %v91 = vsel %vm88, %v90, %v86
    %v92 = vmul.f32 1.0, %v91
    %94 = vrot.lane.b32.xlu0 %v72, 32
    %v95 = vpop.permute.xlu0 %94
    %v97 = vmul.f32 %v92, %v95
    %99 = vrot.lane.b32.xlu0 %v97, 64
    %v100 = vpop.permute.xlu0 %99
    %v102 = vadd.f32 %v72, %v100
    %v103 = vtanh.pop %v102
    %v104 = vsub.f32 1.0, %v92
    %106 = vrot.lane.b32.xlu0 %v103, 96
    %v107 = vpop.permute.xlu0 %106
    %v109 = vmul.f32 %v104, %v107
    %v110 = vperm.slane %v36, 0
    %111 = vrot.lane.b32.xlu0 %v110, 96
    %v112 = vpop.permute.xlu0 %111
    %v114 = vmul.f32 %v92, %v112
    %v115 = vadd.f32 %v109, %v114
    %117 = vrot.lane.b32.xlu0 %v115, 96
    %v118 = vpop.permute.xlu0 %117
    %vm120 = vcmask 253952
    %121 = vst.msk [vmem:[#allocation6] sm:$0x1] %vm120, %v118
    %v122 = vld [vmem:[%s3] sm:$0xff]
    %v123 = vld [vmem:[%s4] sm:$0xff]
    %v124 = vld [vmem:[%s4 + $0x8] sm:$0xff]
    %v125 = vld [vmem:[%s4 + $0x10] sm:$0xff]
    %v126 = vld [vmem:[%s4 + $0x18] sm:$0xff]
    %v127 = vld [vmem:[%s5] sm:$0x1]
    %v129 = vperm.slane %v127, 0
    %vm131 = vcmask 261120
    %v133 = vsel %vm131, %v122, 0
    %135 = vmatpush.msra.mxu0 0.0
    %136 = vmatpush.msra.mxu0 0.0
    %137 = vmatpush.msra.mxu0 0.0
    %138 = vmatpush.msra.mxu0 0.0
    %139 = vmatpush.msra.mxu0 0.0
    %140 = vmatpush.msra.mxu0 0.0
    %141 = vmatpush.msra.mxu0 0.0
    %142 = vmatpush.msra.mxu0 0.0
    %143 = vmatpush.msra.mxu0 0.0
    %144 = vmatpush.msra.mxu0 0.0
    %145 = vmatpush.msra.mxu0 0.0
    %146 = vmatpush.msra.mxu0 0.0
    %147 = vmatpush.msra.mxu0 %v126
    %148 = vmatpush.msra.mxu0 %v125
    %149 = vmatpush.msra.mxu0 %v124
    %150 = vmatpush.msra.mxu0 %v123
    %151 = vmatmul.f32.gmra.mxu0 %v133
    %v152 = vpop.f32.mrf.mxu0
    %v153 = vadd.f32 %v129, %v152
    %154 = vdwg.mxu0
    %v155 = vsel %vm131, %v118, 0
    %v158 = vsel %vm131, %v153, 0
    %160 = vmatpush.xpose.msra.mxu0 0.0
    %161 = vmatpush.xpose.msra.mxu0 0.0
    %162 = vmatpush.xpose.msra.mxu0 0.0
    %163 = vmatpush.xpose.msra.mxu0 0.0
    %164 = vmatpush.xpose.msra.mxu0 0.0
    %165 = vmatpush.xpose.msra.mxu0 0.0
    %166 = vmatpush.xpose.msra.mxu0 0.0
    %167 = vmatpush.xpose.msra.mxu0 0.0
    %168 = vmatpush.xpose.msra.mxu0 0.0
    %169 = vmatpush.xpose.msra.mxu0 0.0
    %170 = vmatpush.xpose.msra.mxu0 0.0
    %171 = vmatpush.xpose.msra.mxu0 0.0
    %172 = vmatpush.xpose.msra.mxu0 0.0
    %173 = vmatpush.xpose.msra.mxu0 0.0
    %174 = vmatpush.xpose.msra.mxu0 0.0
    %175 = vmatpush.xpose.msra.mxu0 %v158
    %176 = vmatmul.f32.gmra.mxu0 %v155
    %v177 = vpop.f32.mrf.mxu0
    %v178 = vadd.f32 0.0, %v177
    %179 = vdwg.mxu0
    %vm180 = vcmask 57344
    %v181 = vsel %vm180, %v178, -inf
    %182 = vmax.xlane.f32.xlu0 %v181
    %v183 = vpop.xlane.xlu0 %182
    %v184 = vsub.f32 %v178, %v183
    %v185 = vmul.f32 %v184, 1.442695
    %v186 = vpow.pop %v185
    %v187 = vsel %vm180, %v186, 0.0
    %188 = vadd.xlane.f32.xlu0 %v187
    %v189 = vpop.xlane.xlu0 %188
    %v190 = vrcp.pop %v189
    %v191 = vmul.f32 %v186, %v190
    %192 = vst.msk [vmem:[#allocation7] sm:$0x1] %vm180, %v191
    %vm193 = vcmask 64512
    %v195 = vsel %vm193, %v191, 0
    %197 = vmatpush.msra.mxu0 0.0
    %198 = vmatpush.msra.mxu0 0.0
    %199 = vmatpush.msra.mxu0 0.0
    %200 = vmatpush.msra.mxu0 0.0
    %201 = vmatpush.msra.mxu0 0.0
    %202 = vmatpush.msra.mxu0 0.0
    %203 = vmatpush.msra.mxu0 0.0
    %204 = vmatpush.msra.mxu0 0.0
    %205 = vmatpush.msra.mxu0 0.0
    %206 = vmatpush.msra.mxu0 0.0
    %207 = vmatpush.msra.mxu0 0.0
    %208 = vmatpush.msra.mxu0 0.0
    %209 = vmatpush.msra.mxu0 0.0
    %210 = vmatpush.msra.mxu0 0.0
    %211 = vmatpush.msra.mxu0 0.0
    %212 = vmatpush.msra.mxu0 %v122
    %213 = vmatmul.f32.gmra.mxu0 %v195
    %v214 = vpop.f32.mrf.mxu0
    %v215 = vadd.f32 0.0, %v214
    %216 = vdwg.mxu0
    %217 = vst.msk [vmem:[#allocation4] sm:$0x1] %vm120, %v215
    %v218 = vld [vmem:[%s6] sm:$0xff]
    %v219 = vld [vmem:[%s6 + $0x8] sm:$0xff]
    %v220 = vld [vmem:[%s6 + $0x10] sm:$0xff]
    %v221 = vld [vmem:[%s6 + $0x18] sm:$0xff]
    %v222 = vld [vmem:[%s6 + $0x20] sm:$0xff]
    %v223 = vld [vmem:[%s6 + $0x28] sm:$0xff]
    %v224 = vld [vmem:[%s6 + $0x30] sm:$0xff]
    %v225 = vld [vmem:[%s6 + $0x38] sm:$0xff]
    %v227 = vsel %vm131, %v215, 0
    %229 = vmatpush.msra.mxu0 0.0
    %230 = vmatpush.msra.mxu0 0.0
    %231 = vmatpush.msra.mxu0 0.0
    %232 = vmatpush.msra.mxu0 0.0
    %233 = vmatpush.msra.mxu0 0.0
    %234 = vmatpush.msra.mxu0 0.0
    %235 = vmatpush.msra.mxu0 0.0
    %236 = vmatpush.msra.mxu0 0.0
    %237 = vmatpush.msra.mxu0 0.0
    %238 = vmatpush.msra.mxu0 0.0
    %239 = vmatpush.msra.mxu0 0.0
    %240 = vmatpush.msra.mxu0 0.0
    %241 = vmatpush.msra.mxu0 %v225
    %242 = vmatpush.msra.mxu0 %v224
    %243 = vmatpush.msra.mxu0 %v223
    %244 = vmatpush.msra.mxu0 %v222
    %245 = vmatmul.f32.gmra.mxu0 %v227
    %v246 = vpop.f32.mrf.mxu0
    %v247 = vadd.f32 0.0, %v246
    %248 = vdwg.mxu0
    %249 = vmatpush.msra.mxu0 0.0
    %250 = vmatpush.msra.mxu0 0.0
    %251 = vmatpush.msra.mxu0 0.0
    %252 = vmatpush.msra.mxu0 0.0
    %253 = vmatpush.msra.mxu0 0.0
    %254 = vmatpush.msra.mxu0 0.0
    %255 = vmatpush.msra.mxu0 0.0
    %256 = vmatpush.msra.mxu0 0.0
    %257 = vmatpush.msra.mxu0 0.0
    %258 = vmatpush.msra.mxu0 0.0
    %259 = vmatpush.msra.mxu0 0.0
    %260 = vmatpush.msra.mxu0 0.0
    %261 = vmatpush.msra.mxu0 %v221
    %262 = vmatpush.msra.mxu0 %v220
    %263 = vmatpush.msra.mxu0 %v219
    %264 = vmatpush.msra.mxu0 %v218
    %265 = vmatmul.f32.gmra.mxu0 %v155
    %v266 = vpop.f32.mrf.mxu0
    %v267 = vadd.f32 %v247, %v266
    %268 = vdwg.mxu0
    %v269 = vld [vmem:[%s7] sm:$0x1]
    %v270 = vadd.f32 %v267, %v269
    %vm271 = vcmask 319488
    %v272 = vsel %vm271, %v270, -inf
    %273 = vmax.xlane.f32.xlu0 %v272
    %v274 = vpop.xlane.xlu0 %273
    %v275 = vsub.f32 %v270, %v274
    %v276 = vmul.f32 %v275, 1.442695
    %v277 = vpow.pop %v276
    %v278 = vsel %vm271, %v277, 0.0
    %279 = vadd.xlane.f32.xlu0 %v278
    %v280 = vpop.xlane.xlu0 %279
    %v281 = vlog2.pop %v280
    %v282 = vmul.f32 %v281, 0.6931472
    %v283 = vsub.f32 %v275, %v282
    %284 = vst.msk [vmem:[#allocation2] sm:$0x1] %vm271, %v283
    // Predicated region
    $region34: #{attn_decoder_apply.1} parent=1 // pred_check
      _
    $region35: #{attn_decoder_apply.1} parent=1 // pred_check_branch
      %286 = sbr.rel (0) target = $region37
    $region36: #{attn_decoder_apply.1} parent=1 // pred_region
      %288 = vsyncadd [#allocation3], 0
      %s290 = sshll.u32 [#allocation2], 4
      %s291 = int_to_ptr.vmem [resolvable:$true] %s290
      %s292 = sshll.u32 %s8, 4
      %s293 = int_to_ptr.hbm [resolvable:$true] %s292
      %295 = dma.vmem_to_hbm [thread:$0]  %s291, 16, %s293, [#allocation3]
    $region37: #{attn_decoder_apply.1} parent=1 // pred_fallthru
      _
    // Predicated region
    $region38: #{attn_decoder_apply.1} parent=1 // pred_check
      _
    $region39: #{attn_decoder_apply.1} parent=1 // pred_check_branch
      %297 = sbr.rel (0) target = $region41
    $region40: #{attn_decoder_apply.1} parent=1 // pred_region
      %299 = vsyncadd [#allocation5], 0
      %s301 = sshll.u32 [#allocation4], 4
      %s302 = int_to_ptr.vmem [resolvable:$true] %s301
      %s303 = sshll.u32 %s9, 4
      %s304 = int_to_ptr.hbm [resolvable:$true] %s303
      %306 = dma.vmem_to_hbm [thread:$0]  %s302, 16, %s304, [#allocation5]
    $region41: #{attn_decoder_apply.1} parent=1 // pred_fallthru
      _
    // Predicated region
    $region42: #{attn_decoder_apply.1} parent=1 // pred_check
      _
    $region43: #{attn_decoder_apply.1} parent=1 // pred_check_branch
      %308 = sbr.rel (0) target = $region45
    $region44: #{attn_decoder_apply.1} parent=1 // pred_region
      %310 = vsyncadd [#allocation5], 0
      %s312 = sshll.u32 [#allocation6], 4
      %s313 = int_to_ptr.vmem [resolvable:$true] %s312
      %s314 = sshll.u32 %s10, 4
      %s315 = int_to_ptr.hbm [resolvable:$true] %s314
      %317 = dma.vmem_to_hbm [thread:$0]  %s313, 16, %s315, [#allocation5]
    $region45: #{attn_decoder_apply.1} parent=1 // pred_fallthru
      _
    // Predicated region
    $region46: #{attn_decoder_apply.1} parent=1 // pred_check
      _
    $region47: #{attn_decoder_apply.1} parent=1 // pred_check_branch
      %319 = sbr.rel (0) target = $region49
    $region48: #{attn_decoder_apply.1} parent=1 // pred_region
      %321 = vsyncadd [#allocation8], 0
      %s323 = sshll.u32 [#allocation7], 4
      %s324 = int_to_ptr.vmem [resolvable:$true] %s323
      %s325 = sshll.u32 %s11, 4
      %s326 = int_to_ptr.hbm [resolvable:$true] %s325
      %328 = dma.vmem_to_hbm [thread:$0]  %s324, 16, %s326, [#allocation8]
    $region49: #{attn_decoder_apply.1} parent=1 // pred_fallthru
      _
    // Predicated region
    $region50: #{attn_decoder_apply.1} parent=1 // pred_check
      _
    $region51: #{attn_decoder_apply.1} parent=1 // pred_check_branch
      %330 = sbr.rel (0) target = $region53
    $region52: #{attn_decoder_apply.1} parent=1 // pred_region
      %332 = dma.done [#allocation3], 16
    $region53: #{attn_decoder_apply.1} parent=1 // pred_fallthru
      _
    // Predicated region
    $region54: #{attn_decoder_apply.1} parent=1 // pred_check
      _
    $region55: #{attn_decoder_apply.1} parent=1 // pred_check_branch
      %334 = sbr.rel (0) target = $region57
    $region56: #{attn_decoder_apply.1} parent=1 // pred_region
      %336 = dma.done [#allocation5], 16
    $region57: #{attn_decoder_apply.1} parent=1 // pred_fallthru
      _
    // Predicated region
    $region58: #{attn_decoder_apply.1} parent=1 // pred_check
      _
    $region59: #{attn_decoder_apply.1} parent=1 // pred_check_branch
      %338 = sbr.rel (0) target = $region61
    $region60: #{attn_decoder_apply.1} parent=1 // pred_region
      %340 = dma.done [#allocation5], 16
    $region61: #{attn_decoder_apply.1} parent=1 // pred_fallthru
      _
    // Predicated region
    $region62: #{attn_decoder_apply.1} parent=1 // pred_check
      _
    $region63: #{attn_decoder_apply.1} parent=1 // pred_check_branch
      %342 = sbr.rel (0) target = $region65
    $region64: #{attn_decoder_apply.1} parent=1 // pred_region
      %344 = dma.done [#allocation8], 16
    $region65: #{attn_decoder_apply.1} parent=1 // pred_fallthru
      _
    %345 = vsyncpa [#allocation3], 1
    %346 = vsyncpa [#allocation5], 1
    %347 = vsyncpa [#allocation8], 1

</llo_original>
